<compile_context>
chip_gen: v7x
topology: tpu7x:2x2x1
jax: 0.10.0
libtpu: 0.0.40
codegen_flags: <defaults>
</compile_context>

<pallas_src>
import functools

import jax
import jax.numpy as jnp
from jax.experimental import pallas as pl
from jax.experimental.pallas import tpu as pltpu

FP = 128  # padded feature width (lanes)


def _round_up(n, m):
    return ((n + m - 1) // m) * m


def _actor_net_kernel(num_hidden_layers, inputs, x_ref, w_ref, aux_ref, out_ref):
    """One batch tile: full forward pass, everything VMEM-resident.

    w_ref   : (4*FP, FP) bf16, rows [0,FP)=w1, [FP,2FP)=wh(shared), [2FP,3FP)=wb,
              [3FP,4FP)=wl; all zero-padded to 128x128.
    aux_ref : (8, FP) f32, row 0=b1, 1=bh, 2=bb, 3=bl,
              row 4 = additive softmax mask (0 real lanes, -1e30 padded lanes).
    """
    x = x_ref[...]  # (TB, inputs) f32 — unpadded real features

    # first_layer: Linear + ReLU (Dropout identity in eval). Only the real
    # `inputs` rows of the padded weight block are needed.
    h = jnp.dot(x.astype(jnp.bfloat16), w_ref[0:inputs, :],
                preferred_element_type=jnp.float32) + aux_ref[0:1, :]
    h = jnp.maximum(h, 0.0)

    # Shared hidden layer, unrolled (num_hidden_layers is small). The shared
    # weight/bias are loaded once, right before their reuse loop.
    if num_hidden_layers > 1:
        wh = w_ref[1 * FP:2 * FP, :]
        bh = aux_ref[1:2, :]
        for _ in range(num_hidden_layers - 1):
            h = jnp.maximum(
                jnp.dot(h.astype(jnp.bfloat16), wh,
                        preferred_element_type=jnp.float32) + bh, 0.0)

    # last_before_layer: Linear(H, H//2) + ReLU (weight loaded at point of use).
    h = jnp.maximum(
        jnp.dot(h.astype(jnp.bfloat16), w_ref[2 * FP:3 * FP, :],
                preferred_element_type=jnp.float32) + aux_ref[2:3, :], 0.0)

    # last_layer: Linear(H//2, out)
    logits = jnp.dot(h.astype(jnp.bfloat16), w_ref[3 * FP:4 * FP, :],
                     preferred_element_type=jnp.float32) + aux_ref[3:4, :]

    # Masked, numerically-stable softmax over the real output lanes only.
    # Padded lanes get -1e30 from the precomputed additive mask row.
    logits = logits + aux_ref[4:5, :]
    m = jnp.max(logits, axis=-1, keepdims=True)
    e = jnp.exp(logits - m)
    denom = jnp.sum(e, axis=-1, keepdims=True)
    out_ref[...] = (e / denom).astype(out_ref.dtype)   # exact normalization


def pack_params(params, inputs, outputs, hidden_dim):
    """Pack weights into a bf16 (4*FP, FP) slab and biases+mask into f32 (8, FP)."""
    def pad_w(w):
        buf = jnp.zeros((FP, FP), jnp.float32)
        return buf.at[:w.shape[0], :w.shape[1]].set(w.astype(jnp.float32))

    w_slab = jnp.concatenate(
        [pad_w(params["w1"]), pad_w(params["wh"]),
         pad_w(params["wb"]), pad_w(params["wl"])], axis=0).astype(jnp.bfloat16)

    aux = jnp.zeros((8, FP), jnp.float32)
    aux = aux.at[0, :hidden_dim].set(params["b1"][0])
    aux = aux.at[1, :hidden_dim].set(params["bh"][0])
    aux = aux.at[2, :hidden_dim // 2].set(params["bb"][0])
    aux = aux.at[3, :outputs].set(params["bl"][0])
    aux = aux.at[4, outputs:].set(-1e30)      # additive softmax mask row
    return w_slab, aux


def actor_net_forward(x, params, num_hidden_layers, *, block_b=None):
    """ActorNet forward via one pallas_call, gridded over batch row tiles.

    x: (B, inputs) float32
    params: dict with w1,b1,wh,bh,wb,bb,wl,bl (weights (in,out), biases (1,out))
    """
    B, inputs = x.shape
    hidden_dim = params["w1"].shape[1]
    outputs = params["wl"].shape[1]
    assert max(inputs, hidden_dim, outputs) <= FP, "pad plan assumes dims <= 128"

    w_slab, aux = pack_params(params, inputs, outputs, hidden_dim)

    if block_b is None:
        # Target 2 grid steps (v7x megacore can shard them); cap tile size so the
        # (block_b, 128) f32 output buffers stay well under v5e's scoped-VMEM
        # default without needing vmem_limit_bytes.
        block_b = min(2048, _round_up(pl.cdiv(B, 2), 8))
    block_b = max(8, _round_up(block_b, 8))
    b_pad = pl.cdiv(B, block_b) * block_b

    x_p = x.astype(jnp.float32)
    if b_pad != B:
        x_p = jnp.zeros((b_pad, inputs), jnp.float32).at[:B].set(x_p)

    kernel = functools.partial(_actor_net_kernel, num_hidden_layers, inputs)

    out_p = pl.pallas_call(
        kernel,
        out_shape=jax.ShapeDtypeStruct((b_pad, FP), jnp.float32),
        grid=(b_pad // block_b,),
        in_specs=[
            # x unpadded: last block dim equals the full array dim -> legal.
            pl.BlockSpec((block_b, inputs), lambda i: (i, 0)),
            pl.BlockSpec((4 * FP, FP), lambda i: (0, 0)),   # bf16 weight slab (resident)
            pl.BlockSpec((8, FP), lambda i: (0, 0)),        # f32 biases + softmax mask
        ],
        out_specs=pl.BlockSpec((block_b, FP), lambda i: (i, 0)),
        compiler_params=pltpu.CompilerParams(
            dimension_semantics=("parallel",)),             # megacore-shardable
    )(x_p, w_slab, aux)

    return out_p[:B, :outputs]


def init_params(key, inputs, outputs, hidden_dim):
    """Deterministic synthetic init (PyTorch-Linear-like uniform fan-in scaling)."""
    def linear(k, fan_in, fan_out):
        kw, kb = jax.random.split(k)
        bound = 1.0 / jnp.sqrt(fan_in)
        w = jax.random.uniform(kw, (fan_in, fan_out), jnp.float32, -bound, bound)
        b = jax.random.uniform(kb, (1, fan_out), jnp.float32, -bound, bound)
        return w, b

    k1, k2, k3, k4 = jax.random.split(key, 4)
    w1, b1 = linear(k1, inputs, hidden_dim)
    wh, bh = linear(k2, hidden_dim, hidden_dim)          # shared hidden layer
    wb, bb = linear(k3, hidden_dim, hidden_dim // 2)
    wl, bl = linear(k4, hidden_dim // 2, outputs)
    return dict(w1=w1, b1=b1, wh=wh, bh=bh, wb=wb, bb=bb, wl=wl, bl=bl)


if __name__ == "__main__":
    # Small shapes consistent with the module; batch large enough to exercise a
    # 2-step parallel grid (2 tiles of 128 rows).
    batch = 256
    inputs = 8
    outputs = 4
    num_hidden_layers = 3
    hidden_dim = inputs * 4  # module default: hidden_dim = inputs * 4

    key = jax.random.PRNGKey(0)
    kx, kp = jax.random.split(key)
    x = jax.random.normal(kx, (batch, inputs), dtype=jnp.float32)
    params = init_params(kp, inputs, outputs, hidden_dim)

    out = actor_net_forward(x, params, num_hidden_layers)
    out = jax.block_until_ready(out)

    # Sanity: shape, and exact softmax normalization -> rows sum to ~1.
    assert out.shape == (batch, outputs)
    assert bool(jnp.allclose(jnp.sum(out, axis=-1), 1.0, atol=1e-3))

    # Reference mirroring the kernel's arithmetic (bf16 dot operands, f32 accum).
    def ref_bf16(x, p):
        def mm(a, w):
            return jnp.dot(a.astype(jnp.bfloat16), w.astype(jnp.bfloat16),
                           preferred_element_type=jnp.float32)
        h = jnp.maximum(mm(x, p["w1"]) + p["b1"], 0.0)
        for _ in range(num_hidden_layers - 1):
            h = jnp.maximum(mm(h, p["wh"]) + p["bh"], 0.0)
        h = jnp.maximum(mm(h, p["wb"]) + p["bb"], 0.0)
        return jax.nn.softmax(mm(h, p["wl"]) + p["bl"], axis=-1)

    assert bool(jnp.allclose(out, ref_bf16(x, params), atol=2e-3))

    # Full-precision eval-mode reference of the original module math
    # (loose tolerance absorbs the intended bf16 weight/activation quantization).
    def ref_f32(x, p):
        h = jnp.maximum(x @ p["w1"] + p["b1"], 0.0)
        for _ in range(num_hidden_layers - 1):
            h = jnp.maximum(h @ p["wh"] + p["bh"], 0.0)
        h = jnp.maximum(h @ p["wb"] + p["bb"], 0.0)
        return jax.nn.softmax(h @ p["wl"] + p["bl"], axis=-1)

    assert bool(jnp.allclose(out, ref_f32(x, params), atol=5e-2))

    print("KERNEL_OK")
</pallas_src>

<mosaic_0001>
module attributes {stable_mosaic.version = 11 : i64} {
  func.func @_actor_net_kernel(%arg0: i32, %arg1: memref<128x8xf32, #tpu.memory_space<vmem>>, %arg2: memref<512x128xbf16, #tpu.memory_space<vmem>>, %arg3: memref<8x128xf32, #tpu.memory_space<vmem>>, %arg4: memref<128x128xf32, #tpu.memory_space<vmem>>) attributes {dimension_semantics = [#tpu.dimension_semantics<parallel>], iteration_bounds = array<i64: 2>, scalar_prefetch = 0 : i64, scratch_operands = 0 : i64, tpu.core_type = #tpu.core_type<tc>, window_params = [{transform_indices = @transform_0, window_bounds = array<i64: 128, 8>}, {pipeline_mode = #tpu.pipeline_mode<synchronous>, transform_indices = @transform_1, window_bounds = array<i64: 512, 128>}, {pipeline_mode = #tpu.pipeline_mode<synchronous>, transform_indices = @transform_2, window_bounds = array<i64: 8, 128>}, {transform_indices = @transform_3, window_bounds = array<i64: 128, 128>}]} {
    %c0 = arith.constant 0 : index
    %c0_0 = arith.constant 0 : index
    %0 = vector.load %arg1[%c0, %c0_0] : memref<128x8xf32, #tpu.memory_space<vmem>>, vector<128x8xf32>
    %1 = arith.truncf %0 : vector<128x8xf32> to vector<128x8xbf16>
    %c0_1 = arith.constant 0 : index
    %c0_2 = arith.constant 0 : index
    %2 = vector.load %arg2[%c0_1, %c0_2] : memref<512x128xbf16, #tpu.memory_space<vmem>>, vector<8x128xbf16>
    %cst = arith.constant dense<0.000000e+00> : vector<128x128xf32>
    %3 = tpu.matmul %1, %2, %cst {dimension_numbers = #tpu.dot_dimension_numbers<[1], [0], [0], [1], [0, 0, 1, 1], [], []>} : vector<128x8xbf16>, vector<8x128xbf16>, vector<128x128xf32> -> vector<128x128xf32>
    %c0_3 = arith.constant 0 : index
    %c0_4 = arith.constant 0 : index
    %4 = vector.load %arg3[%c0_3, %c0_4] : memref<8x128xf32, #tpu.memory_space<vmem>>, vector<1x128xf32>
    %5 = vector.broadcast %4 : vector<1x128xf32> to vector<128x128xf32>
    %6 = arith.addf %3, %5 : vector<128x128xf32>
    %cst_5 = arith.constant 0.000000e+00 : f32
    %7 = vector.broadcast %cst_5 : f32 to vector<128x128xf32>
    %8 = arith.maximumf %6, %7 : vector<128x128xf32>
    %c128 = arith.constant 128 : index
    %c0_6 = arith.constant 0 : index
    %9 = vector.load %arg2[%c128, %c0_6] : memref<512x128xbf16, #tpu.memory_space<vmem>>, vector<128x128xbf16>
    %c1 = arith.constant 1 : index
    %c0_7 = arith.constant 0 : index
    %10 = vector.load %arg3[%c1, %c0_7] : memref<8x128xf32, #tpu.memory_space<vmem>>, vector<1x128xf32>
    %11 = arith.truncf %8 : vector<128x128xf32> to vector<128x128xbf16>
    %cst_8 = arith.constant dense<0.000000e+00> : vector<128x128xf32>
    %12 = tpu.matmul %11, %9, %cst_8 {dimension_numbers = #tpu.dot_dimension_numbers<[1], [0], [0], [1], [0, 0, 1, 1], [], []>} : vector<128x128xbf16>, vector<128x128xbf16>, vector<128x128xf32> -> vector<128x128xf32>
    %13 = vector.broadcast %10 : vector<1x128xf32> to vector<128x128xf32>
    %14 = arith.addf %12, %13 : vector<128x128xf32>
    %cst_9 = arith.constant 0.000000e+00 : f32
    %15 = vector.broadcast %cst_9 : f32 to vector<128x128xf32>
    %16 = arith.maximumf %14, %15 : vector<128x128xf32>
    %17 = arith.truncf %16 : vector<128x128xf32> to vector<128x128xbf16>
    %cst_10 = arith.constant dense<0.000000e+00> : vector<128x128xf32>
    %18 = tpu.matmul %17, %9, %cst_10 {dimension_numbers = #tpu.dot_dimension_numbers<[1], [0], [0], [1], [0, 0, 1, 1], [], []>} : vector<128x128xbf16>, vector<128x128xbf16>, vector<128x128xf32> -> vector<128x128xf32>
    %19 = vector.broadcast %10 : vector<1x128xf32> to vector<128x128xf32>
    %20 = arith.addf %18, %19 : vector<128x128xf32>
    %cst_11 = arith.constant 0.000000e+00 : f32
    %21 = vector.broadcast %cst_11 : f32 to vector<128x128xf32>
    %22 = arith.maximumf %20, %21 : vector<128x128xf32>
    %23 = arith.truncf %22 : vector<128x128xf32> to vector<128x128xbf16>
    %c256 = arith.constant 256 : index
    %c0_12 = arith.constant 0 : index
    %24 = vector.load %arg2[%c256, %c0_12] : memref<512x128xbf16, #tpu.memory_space<vmem>>, vector<128x128xbf16>
    %cst_13 = arith.constant dense<0.000000e+00> : vector<128x128xf32>
    %25 = tpu.matmul %23, %24, %cst_13 {dimension_numbers = #tpu.dot_dimension_numbers<[1], [0], [0], [1], [0, 0, 1, 1], [], []>} : vector<128x128xbf16>, vector<128x128xbf16>, vector<128x128xf32> -> vector<128x128xf32>
    %c2 = arith.constant 2 : index
    %c0_14 = arith.constant 0 : index
    %26 = vector.load %arg3[%c2, %c0_14] : memref<8x128xf32, #tpu.memory_space<vmem>>, vector<1x128xf32>
    %27 = vector.broadcast %26 : vector<1x128xf32> to vector<128x128xf32>
    %28 = arith.addf %25, %27 : vector<128x128xf32>
    %cst_15 = arith.constant 0.000000e+00 : f32
    %29 = vector.broadcast %cst_15 : f32 to vector<128x128xf32>
    %30 = arith.maximumf %28, %29 : vector<128x128xf32>
    %31 = arith.truncf %30 : vector<128x128xf32> to vector<128x128xbf16>
    %c384 = arith.constant 384 : index
    %c0_16 = arith.constant 0 : index
    %32 = vector.load %arg2[%c384, %c0_16] : memref<512x128xbf16, #tpu.memory_space<vmem>>, vector<128x128xbf16>
    %cst_17 = arith.constant dense<0.000000e+00> : vector<128x128xf32>
    %33 = tpu.matmul %31, %32, %cst_17 {dimension_numbers = #tpu.dot_dimension_numbers<[1], [0], [0], [1], [0, 0, 1, 1], [], []>} : vector<128x128xbf16>, vector<128x128xbf16>, vector<128x128xf32> -> vector<128x128xf32>
    %c3 = arith.constant 3 : index
    %c0_18 = arith.constant 0 : index
    %34 = vector.load %arg3[%c3, %c0_18] : memref<8x128xf32, #tpu.memory_space<vmem>>, vector<1x128xf32>
    %35 = vector.broadcast %34 : vector<1x128xf32> to vector<128x128xf32>
    %36 = arith.addf %33, %35 : vector<128x128xf32>
    %c4 = arith.constant 4 : index
    %c0_19 = arith.constant 0 : index
    %37 = vector.load %arg3[%c4, %c0_19] : memref<8x128xf32, #tpu.memory_space<vmem>>, vector<1x128xf32>
    %38 = vector.broadcast %37 : vector<1x128xf32> to vector<128x128xf32>
    %39 = arith.addf %36, %38 : vector<128x128xf32>
    %cst_20 = arith.constant dense<0xFF800000> : vector<128xf32>
    %40 = vector.multi_reduction <maximumf>, %39, %cst_20 [1] : vector<128x128xf32> to vector<128xf32>
    %41 = vector.shape_cast %40 : vector<128xf32> to vector<128x1xf32>
    %42 = vector.broadcast %41 : vector<128x1xf32> to vector<128x128xf32>
    %43 = arith.subf %39, %42 : vector<128x128xf32>
    %44 = math.exp %43 : vector<128x128xf32>
    %cst_21 = arith.constant dense<0.000000e+00> : vector<128xf32>
    %45 = vector.multi_reduction <add>, %44, %cst_21 [1] : vector<128x128xf32> to vector<128xf32>
    %46 = vector.shape_cast %45 : vector<128xf32> to vector<128x1xf32>
    %47 = vector.broadcast %46 : vector<128x1xf32> to vector<128x128xf32>
    %48 = arith.divf %44, %47 : vector<128x128xf32>
    %c0_22 = arith.constant 0 : index
    %c0_23 = arith.constant 0 : index
    %49 = vector.load %arg4[%c0_22, %c0_23] : memref<128x128xf32, #tpu.memory_space<vmem>>, vector<128x128xf32>
    tpu.vector_store %arg4[%c0_22, %c0_23], %48 {strides = array<i32>} : memref<128x128xf32, #tpu.memory_space<vmem>>, vector<128x128xf32>,
    return
  }
  func.func @transform_0(%arg0: i32) -> (i32, i32) {
    %c0_i32 = arith.constant 0 : i32
    %c0_i32_0 = arith.constant 0 : i32
    return %arg0, %c0_i32 : i32, i32
  }
  func.func @transform_1(%arg0: i32) -> (i32, i32) {
    %c0_i32 = arith.constant 0 : i32
    %c0_i32_0 = arith.constant 0 : i32
    %c0_i32_1 = arith.constant 0 : i32
    return %c0_i32, %c0_i32_0 : i32, i32
  }
  func.func @transform_2(%arg0: i32) -> (i32, i32) {
    %c0_i32 = arith.constant 0 : i32
    %c0_i32_0 = arith.constant 0 : i32
    %c0_i32_1 = arith.constant 0 : i32
    return %c0_i32, %c0_i32_0 : i32, i32
  }
  func.func @transform_3(%arg0: i32) -> (i32, i32) {
    %c0_i32 = arith.constant 0 : i32
    %c0_i32_0 = arith.constant 0 : i32
    return %arg0, %c0_i32 : i32, i32
  }
}

</mosaic_0001>

<llo_original>
// kernel: tpu_custom_call.1
$region0: #{tpu_custom_call.1}
  #allocation0 [shape = 'u32[]', space=smem, size = 0x4, offset = 0x4, fixed_abs, tag = 'smem constant byte address 0x4 - core index']
  #allocation1 [shape = 'u32[144,128]{1,0:T(1,128)}', space=vmem, size = 0x12000, scoped, tag = 'internal scratch']
  %s0 = inlined_call_operand.vmem [shape: f32[256,8], index: 0, kind: input, shape index: {}]
  %s1 = inlined_call_operand.vmem [shape: bf16[512,128], index: 1, kind: input, shape index: {}]
  %s2 = inlined_call_operand.vmem [shape: f32[8,128], index: 2, kind: input, shape index: {}]
  %s3 = inlined_call_operand.hbm [shape: f32[256,128], index: 3, kind: output, shape index: {}]
  %s4 = sld [smem:[#allocation0]]
  $region45: #{tpu_custom_call.1} parent=0
    _
  %s6 = ssub.s32 1, %s4
  %s7 = scalar_select 0, %s6, %s4
  $region1: #{tpu_custom_call.1} parent=0
    #allocation2 [shape = 'u8[131072]{0}', space=vmem, size = 0x20000, scoped, tag = 'output window, operand 0']
    #allocation3 [shape = 's32[2]{0}', space=sflag, size = 0x8, scoped, tag = 'scoped memory for tpu_custom_call.1']
    %8 = vsyncpa [#allocation3], 0
    %s9 = scalar_lea.sflag [#allocation3], 1
    %10 = vsyncpa %s9, 0
    loop: start=0, step=1, limit=4
    $region2: #{tpu_custom_call.1} parent=1 // loop_pre_header
      _
    $region3: #{tpu_custom_call.1} parent=1 // loop_header
      %s12 = sphi 0, %s16
      %p13 = scmp.ge.s32.totalorder %s12, 4
      %s22 = sphi 0, %s24
      %s25 = sphi 0, %s22
      %s26 = sphi 0, %s25
      %s42 = sphi 0, %s26
      %s46 = sphi 0, %s46
      %s48 = sphi 0, %s46
      %s49 = sphi 0, %s48
      %s63 = sphi 0, %s49
      %s67 = sphi 0, %s67
      %s69 = sphi 0, %s67
      %s70 = sphi 0, %s69
      %s84 = sphi 0, %s70
      %s90 = sphi 0, %s92
      %s93 = sphi 0, %s90
      %s94 = sphi 0, %s93
      %s110 = sphi 0, %s94
    $region4: #{tpu_custom_call.1} parent=1 // loop_header_branch
      %15 = sbr.rel (%p13) target = $region8
    $region5: #{tpu_custom_call.1} parent=1 // loop_body
      %s17 = ssub.s32 %s12, 1
      %s18 = ssub.s32 %s12, 2
      %s19 = sadd.s32 %s12, 1
      %s20 = ssub.s32 %s12, %s19
      %p21 = scmp.eq.s32.totalorder %s20, 0
      %s23 = sadd.s32 %s22, 1
      %s24 = scalar_select %p21, %s22, %s23
      %p27 = pneg %p21
      %p28 = scmp.eq.s32.totalorder %s12, 1
      %p29 = por %p27, %p28
      %p30 = scmp.ne.s32.totalorder %s22, %s25
      %p31 = scmp.eq.s32.totalorder %s12, 0
      %p32 = por %p30, %p31
      %p33 = scmp.ne.s32.totalorder %s22, %s25
      %p34 = scmp.eq.s32.totalorder %s17, 1
      %p35 = por %p33, %p34
      %p36 = scmp.ne.s32.totalorder %s25, %s26
      %p37 = scmp.eq.s32.totalorder %s17, 0
      %p38 = por %p36, %p37
      %p39 = scmp.ne.s32.totalorder %s25, %s26
      %p40 = scmp.eq.s32.totalorder %s18, 1
      %p41 = por %p39, %p40
      %p43 = scmp.ne.s32.totalorder %s26, %s42
      %p44 = scmp.eq.s32.totalorder %s18, 0
      %p45 = por %p43, %p44
      %s47 = sadd.s32 %s46, 1
      %p50 = scmp.eq.s32.totalorder %s12, 1
      %p51 = scmp.ne.s32.totalorder %s46, %s48
      %p52 = scmp.eq.s32.totalorder %s12, 0
      %p53 = por %p51, %p52
      %p54 = scmp.ne.s32.totalorder %s46, %s48
      %p55 = scmp.eq.s32.totalorder %s17, 1
      %p56 = por %p54, %p55
      %p57 = scmp.ne.s32.totalorder %s48, %s49
      %p58 = scmp.eq.s32.totalorder %s17, 0
      %p59 = por %p57, %p58
      %p60 = scmp.ne.s32.totalorder %s48, %s49
      %p61 = scmp.eq.s32.totalorder %s18, 1
      %p62 = por %p60, %p61
      %p64 = scmp.ne.s32.totalorder %s49, %s63
      %p65 = scmp.eq.s32.totalorder %s18, 0
      %p66 = por %p64, %p65
      %s68 = sadd.s32 %s67, 1
      %p71 = scmp.eq.s32.totalorder %s12, 1
      %p72 = scmp.ne.s32.totalorder %s67, %s69
      %p73 = scmp.eq.s32.totalorder %s12, 0
      %p74 = por %p72, %p73
      %p75 = scmp.ne.s32.totalorder %s67, %s69
      %p76 = scmp.eq.s32.totalorder %s17, 1
      %p77 = por %p75, %p76
      %p78 = scmp.ne.s32.totalorder %s69, %s70
      %p79 = scmp.eq.s32.totalorder %s17, 0
      %p80 = por %p78, %p79
      %p81 = scmp.ne.s32.totalorder %s69, %s70
      %p82 = scmp.eq.s32.totalorder %s18, 1
      %p83 = por %p81, %p82
      %p85 = scmp.ne.s32.totalorder %s70, %s84
      %p86 = scmp.eq.s32.totalorder %s18, 0
      %p87 = por %p85, %p86
      %s88 = ssub.s32 %s12, %s19
      %p89 = scmp.eq.s32.totalorder %s88, 0
      %s91 = sadd.s32 %s90, 1
      %s92 = scalar_select %p89, %s90, %s91
      %p95 = pneg %p89
      %p96 = scmp.eq.s32.totalorder %s12, 1
      %p97 = por %p95, %p96
      %p98 = scmp.ne.s32.totalorder %s90, %s93
      %p99 = scmp.eq.s32.totalorder %s12, 0
      %p100 = por %p98, %p99
      %p101 = scmp.ne.s32.totalorder %s90, %s93
      %p102 = scmp.eq.s32.totalorder %s17, 1
      %p103 = por %p101, %p102
      %p104 = scmp.ne.s32.totalorder %s93, %s94
      %p105 = scmp.eq.s32.totalorder %s17, 0
      %p106 = por %p104, %p105
      %p107 = scmp.ne.s32.totalorder %s93, %s94
      %p108 = scmp.eq.s32.totalorder %s18, 1
      %p109 = por %p107, %p108
      %p111 = scmp.ne.s32.totalorder %s94, %s110
      %p112 = scmp.eq.s32.totalorder %s18, 0
      %p113 = por %p111, %p112
      %p114 = scmp.le.s32.totalorder 1, %s12
      %p115 = scmp.lt.s32.totalorder %s12, 3
      %p116 = pnand %p114, %p115
      %p117 = pneg %p116
      // Predicated region
      $region9: #{tpu_custom_call.1} parent=5 // pred_check
        _
      $region10: #{tpu_custom_call.1} parent=5 // pred_check_branch
        %119 = sbr.rel (%p116) target = $region12
      $region11: #{tpu_custom_call.1} parent=5 // pred_region
        %s120 = ssub.s32 %s12, 1
        // Predicated region
        $region13: #{tpu_custom_call.1} parent=11 // pred_check
          %p121 = pneg %p59
        $region14: #{tpu_custom_call.1} parent=11 // pred_check_branch
          %123 = sbr.rel (%p121) target = $region16
        $region15: #{tpu_custom_call.1} parent=11 // pred_region
          _
        $region16: #{tpu_custom_call.1} parent=11 // pred_fallthru
          _
        // Predicated region
        $region17: #{tpu_custom_call.1} parent=11 // pred_check
          %p124 = pneg %p80
        $region18: #{tpu_custom_call.1} parent=11 // pred_check_branch
          %126 = sbr.rel (%p124) target = $region20
        $region19: #{tpu_custom_call.1} parent=11 // pred_region
          _
        $region20: #{tpu_custom_call.1} parent=11 // pred_fallthru
          _
      $region12: #{tpu_custom_call.1} parent=5 // pred_fallthru
        _
      %p127 = scmp.lt.s32.totalorder %s12, 2
      // Predicated region
      $region21: #{tpu_custom_call.1} parent=5 // pred_check
        %p128 = pneg %p127
      $region22: #{tpu_custom_call.1} parent=5 // pred_check_branch
        %130 = sbr.rel (%p128) target = $region24
      $region23: #{tpu_custom_call.1} parent=5 // pred_region
        // Predicated region
        $region25: #{tpu_custom_call.1} parent=23 // pred_check
          %p131 = pneg %p32
        $region26: #{tpu_custom_call.1} parent=23 // pred_check_branch
          %133 = sbr.rel (%p131) target = $region28
        $region27: #{tpu_custom_call.1} parent=23 // pred_region
          %s134 = smul.u32 16, %s12
          %p135 = scmp.lt.s32.totalorder %s134, 31
          %s136 = scalar_select %p135, %s134, 31
          %s137 = smul.addr %s136, 8
          %s138 = scalar_lea.vmem %s0, %s137
          %s139 = smul.u32 16, %s12
        $region28: #{tpu_custom_call.1} parent=23 // pred_fallthru
          _
      $region24: #{tpu_custom_call.1} parent=5 // pred_fallthru
        _
      %p140 = scmp.le.s32.totalorder 1, %s12
      %p141 = scmp.lt.s32.totalorder %s12, 3
      %p142 = pnand %p140, %p141
      %p143 = pneg %p142
      // Predicated region
      $region29: #{tpu_custom_call.1} parent=5 // pred_check
        _
      $region30: #{tpu_custom_call.1} parent=5 // pred_check_branch
        %145 = sbr.rel (%p142) target = $region32
      $region31: #{tpu_custom_call.1} parent=5 // pred_region
        %s146 = ssub.s32 %s12, 1
        %s147 = smul.u32 16, %s17
        %p148 = scmp.lt.s32.totalorder %s147, 31
        %s149 = scalar_select %p148, %s147, 31
        %s150 = smul.addr %s149, 8
        %s151 = scalar_lea.vmem %s0, %s150
        %p152 = pneg %p38
        %p153 = pneg %p35
        %p154 = pneg %p59
        %p155 = pneg %p56
        %p156 = pneg %p80
        %p157 = pneg %p77
        %p158 = pneg %p106
        %p159 = pneg %p103
        %s160 = sand.u32 %s93, 1
        %s161 = scalar_lea.sflag [#allocation3], %s160
        %s162 = sand.u32 %s93, 1
        %s163 = smul.addr %s162, 128
        %s164 = scalar_lea.vmem [#allocation2], %s163
        %s165 = smul.u32 16, %s17
        %p166 = scmp.lt.s32.totalorder %s165, 31
        %s167 = scalar_select %p166, %s165, 31
        %s168 = smul.addr %s167, 8
        %s169 = scalar_lea.vmem %s0, %s168
        %s170 = smul.u32 16, %s17
        %s171 = smul.u32 16, %s17
        %v173 = vld [vmem:[%s169] sm:$0xff]
        %v174 = vld [vmem:[%s169 + $0x8] sm:$0xff]
        %v175 = vld [vmem:[%s169 + $0x10] sm:$0xff]
        %v176 = vld [vmem:[%s169 + $0x18] sm:$0xff]
        %v177 = vld [vmem:[%s169 + $0x20] sm:$0xff]
        %v178 = vld [vmem:[%s169 + $0x28] sm:$0xff]
        %v179 = vld [vmem:[%s169 + $0x30] sm:$0xff]
        %v180 = vld [vmem:[%s169 + $0x38] sm:$0xff]
        %v181 = vld [vmem:[%s169 + $0x40] sm:$0xff]
        %v182 = vld [vmem:[%s169 + $0x48] sm:$0xff]
        %v183 = vld [vmem:[%s169 + $0x50] sm:$0xff]
        %v184 = vld [vmem:[%s169 + $0x58] sm:$0xff]
        %v185 = vld [vmem:[%s169 + $0x60] sm:$0xff]
        %v186 = vld [vmem:[%s169 + $0x68] sm:$0xff]
        %v187 = vld [vmem:[%s169 + $0x70] sm:$0xff]
        %v188 = vld [vmem:[%s169 + $0x78] sm:$0xff]
        %v189 = vpack.c.bf16 %v174, %v173
        %v190 = vpack.c.bf16 %v176, %v175
        %v191 = vpack.c.bf16 %v178, %v177
        %v192 = vpack.c.bf16 %v180, %v179
        %v193 = vpack.c.bf16 %v182, %v181
        %v194 = vpack.c.bf16 %v184, %v183
        %v195 = vpack.c.bf16 %v186, %v185
        %v196 = vpack.c.bf16 %v188, %v187
        %v197 = vld [vmem:[%s1] sm:$0xf]
        %v198 = vld [vmem:[%s2] sm:$0x1]
        %v199 = vlaneseq
        %v200 = vshrl.u32 %v199, 7
        %v201 = vsub.s32 0, %v200
        %v202 = vrot.slane %v198, %v201
        %vm203 = vcmask 64512
        %v205 = vsel %vm203, %v189, 0
        %v208 = vsel %vm203, %v190, 0
        %v211 = vsel %vm203, %v191, 0
        %v214 = vsel %vm203, %v192, 0
        %v217 = vsel %vm203, %v193, 0
        %v220 = vsel %vm203, %v194, 0
        %v223 = vsel %vm203, %v195, 0
        %v226 = vsel %vm203, %v196, 0
        %vm228 = vcmask 1043456
        %v230 = vsel %vm228, %v197, 0
        %232 = vmatprep.subr.bf16.mxu0 0
        %233 = vmatpush1.bf16.msra.mxu0 %v230
        %234 = vmatprep.subr.bf16.mxu0 0
        %235 = vmatpush1.bf16.msra.mxu0 0
        %236 = vmatprep.subr.bf16.mxu0 0
        %237 = vmatpush1.bf16.msra.mxu0 0
        %238 = vmatprep.subr.bf16.mxu0 0
        %239 = vmatpush1.bf16.msra.mxu0 0
        %240 = vmatprep.subr.bf16.mxu0 0
        %241 = vmatpush1.bf16.msra.mxu0 0
        %242 = vmatprep.subr.bf16.mxu0 0
        %243 = vmatpush1.bf16.msra.mxu0 0
        %244 = vmatprep.subr.bf16.mxu0 0
        %245 = vmatpush1.bf16.msra.mxu0 0
        %246 = vmatprep.subr.bf16.mxu0 0
        %247 = vmatpush1.bf16.msra.mxu0 0
        %248 = vmatprep.subr.bf16.mxu0 0
        %249 = vmatpush1.bf16.msra.mxu0 0
        %250 = vmatprep.subr.bf16.mxu0 0
        %251 = vmatpush1.bf16.msra.mxu0 0
        %252 = vmatprep.subr.bf16.mxu0 0
        %253 = vmatpush1.bf16.msra.mxu0 0
        %254 = vmatprep.subr.bf16.mxu0 0
        %255 = vmatpush1.bf16.msra.mxu0 0
        %256 = vmatprep.subr.bf16.mxu0 0
        %257 = vmatpush1.bf16.msra.mxu0 0
        %258 = vmatprep.subr.bf16.mxu0 0
        %259 = vmatpush1.bf16.msra.mxu0 0
        %260 = vmatprep.subr.bf16.mxu0 0
        %261 = vmatpush1.bf16.msra.mxu0 0
        %262 = vmatprep.subr.bf16.mxu0 0
        %263 = vmatpush1.bf16.msra.mxu0 0
        %264 = vmatprep.mubr.bf16.mxu0 0
        %265 = vmatmul.mubr.bf16.gmra.mrb[0].mxu0 %v205
        %v266 = vpop.f32.mrb[0].mxu0
        %v267 = vadd.f32 %v202, %v266
        %v268 = vpop.f32.mrb[0].mxu0
        %v269 = vpop.f32.mrb[0].mxu0
        %v270 = vadd.f32 %v202, %v269
        %v271 = vpop.f32.mrb[0].mxu0
        %272 = vmatprep.mubr.bf16.mxu0 0
        %273 = vmatmul.mubr.bf16.gmra.mrb[0].mxu0 %v208
        %v274 = vpop.f32.mrb[0].mxu0
        %v275 = vadd.f32 %v202, %v274
        %v276 = vpop.f32.mrb[0].mxu0
        %v277 = vpop.f32.mrb[0].mxu0
        %v278 = vadd.f32 %v202, %v277
        %v279 = vpop.f32.mrb[0].mxu0
        %280 = vmatprep.mubr.bf16.mxu0 0
        %281 = vmatmul.mubr.bf16.gmra.mrb[0].mxu0 %v211
        %v282 = vpop.f32.mrb[0].mxu0
        %v283 = vadd.f32 %v202, %v282
        %v284 = vpop.f32.mrb[0].mxu0
        %v285 = vpop.f32.mrb[0].mxu0
        %v286 = vadd.f32 %v202, %v285
        %v287 = vpop.f32.mrb[0].mxu0
        %288 = vmatprep.mubr.bf16.mxu0 0
        %289 = vmatmul.mubr.bf16.gmra.mrb[0].mxu0 %v214
        %v290 = vpop.f32.mrb[0].mxu0
        %v291 = vadd.f32 %v202, %v290
        %v292 = vpop.f32.mrb[0].mxu0
        %v293 = vpop.f32.mrb[0].mxu0
        %v294 = vadd.f32 %v202, %v293
        %v295 = vpop.f32.mrb[0].mxu0
        %296 = vmatprep.mubr.bf16.mxu0 0
        %297 = vmatmul.mubr.bf16.gmra.mrb[0].mxu0 %v217
        %v298 = vpop.f32.mrb[0].mxu0
        %v299 = vadd.f32 %v202, %v298
        %v300 = vpop.f32.mrb[0].mxu0
        %v301 = vpop.f32.mrb[0].mxu0
        %v302 = vadd.f32 %v202, %v301
        %v303 = vpop.f32.mrb[0].mxu0
        %304 = vmatprep.mubr.bf16.mxu0 0
        %305 = vmatmul.mubr.bf16.gmra.mrb[0].mxu0 %v220
        %v306 = vpop.f32.mrb[0].mxu0
        %v307 = vadd.f32 %v202, %v306
        %v308 = vpop.f32.mrb[0].mxu0
        %v309 = vpop.f32.mrb[0].mxu0
        %v310 = vadd.f32 %v202, %v309
        %v311 = vpop.f32.mrb[0].mxu0
        %312 = vmatprep.mubr.bf16.mxu0 0
        %313 = vmatmul.mubr.bf16.gmra.mrb[0].mxu0 %v223
        %v314 = vpop.f32.mrb[0].mxu0
        %v315 = vadd.f32 %v202, %v314
        %v316 = vpop.f32.mrb[0].mxu0
        %v317 = vpop.f32.mrb[0].mxu0
        %v318 = vadd.f32 %v202, %v317
        %v319 = vpop.f32.mrb[0].mxu0
        %320 = vmatprep.mubr.bf16.mxu0 0
        %321 = vmatmul.mubr.bf16.gmra.mrb[0].mxu0 %v226
        %v322 = vpop.f32.mrb[0].mxu0
        %v323 = vadd.f32 %v202, %v322
        %v324 = vpop.f32.mrb[0].mxu0
        %v325 = vpop.f32.mrb[0].mxu0
        %v326 = vadd.f32 %v202, %v325
        %v327 = vpop.f32.mrb[0].mxu0
        %328 = vdwg.mxu0
        %v329 = vmax.f32 %v267, 0.0
        %v330 = vmax.f32 %v270, 0.0
        %v331 = vmax.f32 %v275, 0.0
        %v332 = vmax.f32 %v278, 0.0
        %v333 = vmax.f32 %v283, 0.0
        %v334 = vmax.f32 %v286, 0.0
        %v335 = vmax.f32 %v291, 0.0
        %v336 = vmax.f32 %v294, 0.0
        %v337 = vmax.f32 %v299, 0.0
        %v338 = vmax.f32 %v302, 0.0
        %v339 = vmax.f32 %v307, 0.0
        %v340 = vmax.f32 %v310, 0.0
        %v341 = vmax.f32 %v315, 0.0
        %v342 = vmax.f32 %v318, 0.0
        %v343 = vmax.f32 %v323, 0.0
        %v344 = vmax.f32 %v326, 0.0
        %v345 = vld [vmem:[%s1 + $0x40] sm:$0xf]
        %v346 = vld [vmem:[%s1 + $0x44] sm:$0xf]
        %v347 = vld [vmem:[%s1 + $0x48] sm:$0xf]
        %v348 = vld [vmem:[%s1 + $0x4c] sm:$0xf]
        %v349 = vld [vmem:[%s1 + $0x50] sm:$0xf]
        %v350 = vld [vmem:[%s1 + $0x54] sm:$0xf]
        %v351 = vld [vmem:[%s1 + $0x58] sm:$0xf]
        %v352 = vld [vmem:[%s1 + $0x5c] sm:$0xf]
        %v353 = vld [vmem:[%s1 + $0x60] sm:$0xf]
        %v354 = vld [vmem:[%s1 + $0x64] sm:$0xf]
        %v355 = vld [vmem:[%s1 + $0x68] sm:$0xf]
        %v356 = vld [vmem:[%s1 + $0x6c] sm:$0xf]
        %v357 = vld [vmem:[%s1 + $0x70] sm:$0xf]
        %v358 = vld [vmem:[%s1 + $0x74] sm:$0xf]
        %v359 = vld [vmem:[%s1 + $0x78] sm:$0xf]
        %v360 = vld [vmem:[%s1 + $0x7c] sm:$0xf]
        %v361 = vld [vmem:[%s2 + $0x1] sm:$0x1]
        %v362 = vpack.c.bf16 %v330, %v329
        %v363 = vpack.c.bf16 %v332, %v331
        %v364 = vpack.c.bf16 %v334, %v333
        %v365 = vpack.c.bf16 %v336, %v335
        %v366 = vpack.c.bf16 %v338, %v337
        %v367 = vpack.c.bf16 %v340, %v339
        %v368 = vpack.c.bf16 %v342, %v341
        %v369 = vpack.c.bf16 %v344, %v343
        %v370 = vlaneseq
        %v371 = vshrl.u32 %v370, 7
        %v372 = vsub.s32 0, %v371
        %v373 = vrot.slane %v361, %v372
        %v390 = vunpack.c.l.b16 %v345
        %v391 = vunpack.c.l.b16 %v346
        %v392 = vunpack.c.l.b16 %v347
        %v393 = vunpack.c.l.b16 %v348
        %v394 = vunpack.c.l.b16 %v349
        %v395 = vunpack.c.l.b16 %v350
        %v396 = vunpack.c.l.b16 %v351
        %v397 = vunpack.c.l.b16 %v352
        %v398 = vunpack.c.l.b16 %v353
        %v399 = vunpack.c.l.b16 %v354
        %v400 = vunpack.c.l.b16 %v355
        %v401 = vunpack.c.l.b16 %v356
        %v402 = vunpack.c.l.b16 %v357
        %v403 = vunpack.c.l.b16 %v358
        %v404 = vunpack.c.l.b16 %v359
        %v405 = vunpack.c.l.b16 %v360
        %v406 = vpack.c.b16 %v391, %v390
        %v407 = vpack.c.b16 %v393, %v392
        %v408 = vpack.c.b16 %v395, %v394
        %v409 = vpack.c.b16 %v397, %v396
        %v410 = vpack.c.b16 %v399, %v398
        %v411 = vpack.c.b16 %v401, %v400
        %v412 = vpack.c.b16 %v403, %v402
        %v413 = vpack.c.b16 %v405, %v404
        %422 = vmatprep.subr.bf16.mxu0 0
        %423 = vmatpush1.bf16.msra.mxu0 %v406
        %424 = vmatprep.subr.bf16.mxu0 0
        %425 = vmatpush1.bf16.msra.mxu0 %v407
        %426 = vmatprep.subr.bf16.mxu0 0
        %427 = vmatpush1.bf16.msra.mxu0 %v408
        %428 = vmatprep.subr.bf16.mxu0 0
        %429 = vmatpush1.bf16.msra.mxu0 %v409
        %430 = vmatprep.subr.bf16.mxu0 0
        %431 = vmatpush1.bf16.msra.mxu0 %v410
        %432 = vmatprep.subr.bf16.mxu0 0
        %433 = vmatpush1.bf16.msra.mxu0 %v411
        %434 = vmatprep.subr.bf16.mxu0 0
        %435 = vmatpush1.bf16.msra.mxu0 %v412
        %436 = vmatprep.subr.bf16.mxu0 0
        %437 = vmatpush1.bf16.msra.mxu0 %v413
        %438 = vmatprep.subr.bf16.mxu0 0
        %439 = vmatpush1.bf16.msra.mxu0 0
        %440 = vmatprep.subr.bf16.mxu0 0
        %441 = vmatpush1.bf16.msra.mxu0 0
        %442 = vmatprep.subr.bf16.mxu0 0
        %443 = vmatpush1.bf16.msra.mxu0 0
        %444 = vmatprep.subr.bf16.mxu0 0
        %445 = vmatpush1.bf16.msra.mxu0 0
        %446 = vmatprep.subr.bf16.mxu0 0
        %447 = vmatpush1.bf16.msra.mxu0 0
        %448 = vmatprep.subr.bf16.mxu0 0
        %449 = vmatpush1.bf16.msra.mxu0 0
        %450 = vmatprep.subr.bf16.mxu0 0
        %451 = vmatpush1.bf16.msra.mxu0 0
        %452 = vmatprep.subr.bf16.mxu0 0
        %453 = vmatpush1.bf16.msra.mxu0 0
        %454 = vmatprep.mubr.bf16.mxu0 0
        %455 = vmatmul.mubr.bf16.gmra.mrb[0].mxu0 %v362
        %v456 = vpop.f32.mrb[0].mxu0
        %v457 = vadd.f32 %v373, %v456
        %v458 = vpop.f32.mrb[0].mxu0
        %v459 = vpop.f32.mrb[0].mxu0
        %v460 = vadd.f32 %v373, %v459
        %v461 = vpop.f32.mrb[0].mxu0
        %462 = vmatprep.mubr.bf16.mxu0 0
        %463 = vmatmul.mubr.bf16.gmra.mrb[0].mxu0 %v363
        %v464 = vpop.f32.mrb[0].mxu0
        %v465 = vadd.f32 %v373, %v464
        %v466 = vpop.f32.mrb[0].mxu0
        %v467 = vpop.f32.mrb[0].mxu0
        %v468 = vadd.f32 %v373, %v467
        %v469 = vpop.f32.mrb[0].mxu0
        %470 = vmatprep.mubr.bf16.mxu0 0
        %471 = vmatmul.mubr.bf16.gmra.mrb[0].mxu0 %v364
        %v472 = vpop.f32.mrb[0].mxu0
        %v473 = vadd.f32 %v373, %v472
        %v474 = vpop.f32.mrb[0].mxu0
        %v475 = vpop.f32.mrb[0].mxu0
        %v476 = vadd.f32 %v373, %v475
        %v477 = vpop.f32.mrb[0].mxu0
        %478 = vmatprep.mubr.bf16.mxu0 0
        %479 = vmatmul.mubr.bf16.gmra.mrb[0].mxu0 %v365
        %v480 = vpop.f32.mrb[0].mxu0
        %v481 = vadd.f32 %v373, %v480
        %v482 = vpop.f32.mrb[0].mxu0
        %v483 = vpop.f32.mrb[0].mxu0
        %v484 = vadd.f32 %v373, %v483
        %v485 = vpop.f32.mrb[0].mxu0
        %486 = vmatprep.mubr.bf16.mxu0 0
        %487 = vmatmul.mubr.bf16.gmra.mrb[0].mxu0 %v366
        %v488 = vpop.f32.mrb[0].mxu0
        %v489 = vadd.f32 %v373, %v488
        %v490 = vpop.f32.mrb[0].mxu0
        %v491 = vpop.f32.mrb[0].mxu0
        %v492 = vadd.f32 %v373, %v491
        %v493 = vpop.f32.mrb[0].mxu0
        %494 = vmatprep.mubr.bf16.mxu0 0
        %495 = vmatmul.mubr.bf16.gmra.mrb[0].mxu0 %v367
        %v496 = vpop.f32.mrb[0].mxu0
        %v497 = vadd.f32 %v373, %v496
        %v498 = vpop.f32.mrb[0].mxu0
        %v499 = vpop.f32.mrb[0].mxu0
        %v500 = vadd.f32 %v373, %v499
        %v501 = vpop.f32.mrb[0].mxu0
        %502 = vmatprep.mubr.bf16.mxu0 0
        %503 = vmatmul.mubr.bf16.gmra.mrb[0].mxu0 %v368
        %v504 = vpop.f32.mrb[0].mxu0
        %v505 = vadd.f32 %v373, %v504
        %v506 = vpop.f32.mrb[0].mxu0
        %v507 = vpop.f32.mrb[0].mxu0
        %v508 = vadd.f32 %v373, %v507
        %v509 = vpop.f32.mrb[0].mxu0
        %510 = vmatprep.mubr.bf16.mxu0 0
        %511 = vmatmul.mubr.bf16.gmra.mrb[0].mxu0 %v369
        %v512 = vpop.f32.mrb[0].mxu0
        %v513 = vadd.f32 %v373, %v512
        %v514 = vpop.f32.mrb[0].mxu0
        %v515 = vpop.f32.mrb[0].mxu0
        %v516 = vadd.f32 %v373, %v515
        %v517 = vpop.f32.mrb[0].mxu0
        %518 = vdwg.mxu0
        %v519 = vmax.f32 %v457, 0.0
        %v520 = vmax.f32 %v460, 0.0
        %v521 = vmax.f32 %v465, 0.0
        %v522 = vmax.f32 %v468, 0.0
        %v523 = vmax.f32 %v473, 0.0
        %v524 = vmax.f32 %v476, 0.0
        %v525 = vmax.f32 %v481, 0.0
        %v526 = vmax.f32 %v484, 0.0
        %v527 = vmax.f32 %v489, 0.0
        %v528 = vmax.f32 %v492, 0.0
        %v529 = vmax.f32 %v497, 0.0
        %v530 = vmax.f32 %v500, 0.0
        %v531 = vmax.f32 %v505, 0.0
        %v532 = vmax.f32 %v508, 0.0
        %v533 = vmax.f32 %v513, 0.0
        %v534 = vmax.f32 %v516, 0.0
        %v535 = vpack.c.bf16 %v520, %v519
        %v536 = vpack.c.bf16 %v522, %v521
        %v537 = vpack.c.bf16 %v524, %v523
        %v538 = vpack.c.bf16 %v526, %v525
        %v539 = vpack.c.bf16 %v528, %v527
        %v540 = vpack.c.bf16 %v530, %v529
        %v541 = vpack.c.bf16 %v532, %v531
        %v542 = vpack.c.bf16 %v534, %v533
        %543 = vmatprep.subr.bf16.mxu0 0
        %544 = vmatpush1.bf16.msra.mxu0 %v406
        %545 = vmatprep.subr.bf16.mxu0 0
        %546 = vmatpush1.bf16.msra.mxu0 %v407
        %547 = vmatprep.subr.bf16.mxu0 0
        %548 = vmatpush1.bf16.msra.mxu0 %v408
        %549 = vmatprep.subr.bf16.mxu0 0
        %550 = vmatpush1.bf16.msra.mxu0 %v409
        %551 = vmatprep.subr.bf16.mxu0 0
        %552 = vmatpush1.bf16.msra.mxu0 %v410
        %553 = vmatprep.subr.bf16.mxu0 0
        %554 = vmatpush1.bf16.msra.mxu0 %v411
        %555 = vmatprep.subr.bf16.mxu0 0
        %556 = vmatpush1.bf16.msra.mxu0 %v412
        %557 = vmatprep.subr.bf16.mxu0 0
        %558 = vmatpush1.bf16.msra.mxu0 %v413
        %559 = vmatprep.subr.bf16.mxu0 0
        %560 = vmatpush1.bf16.msra.mxu0 0
        %561 = vmatprep.subr.bf16.mxu0 0
        %562 = vmatpush1.bf16.msra.mxu0 0
        %563 = vmatprep.subr.bf16.mxu0 0
        %564 = vmatpush1.bf16.msra.mxu0 0
        %565 = vmatprep.subr.bf16.mxu0 0
        %566 = vmatpush1.bf16.msra.mxu0 0
        %567 = vmatprep.subr.bf16.mxu0 0
        %568 = vmatpush1.bf16.msra.mxu0 0
        %569 = vmatprep.subr.bf16.mxu0 0
        %570 = vmatpush1.bf16.msra.mxu0 0
        %571 = vmatprep.subr.bf16.mxu0 0
        %572 = vmatpush1.bf16.msra.mxu0 0
        %573 = vmatprep.subr.bf16.mxu0 0
        %574 = vmatpush1.bf16.msra.mxu0 0
        %575 = vmatprep.mubr.bf16.mxu0 0
        %576 = vmatmul.mubr.bf16.gmra.mrb[0].mxu0 %v535
        %v577 = vpop.f32.mrb[0].mxu0
        %v578 = vadd.f32 %v373, %v577
        %v579 = vpop.f32.mrb[0].mxu0
        %v580 = vpop.f32.mrb[0].mxu0
        %v581 = vadd.f32 %v373, %v580
        %v582 = vpop.f32.mrb[0].mxu0
        %583 = vmatprep.mubr.bf16.mxu0 0
        %584 = vmatmul.mubr.bf16.gmra.mrb[0].mxu0 %v536
        %v585 = vpop.f32.mrb[0].mxu0
        %v586 = vadd.f32 %v373, %v585
        %v587 = vpop.f32.mrb[0].mxu0
        %v588 = vpop.f32.mrb[0].mxu0
        %v589 = vadd.f32 %v373, %v588
        %v590 = vpop.f32.mrb[0].mxu0
        %591 = vmatprep.mubr.bf16.mxu0 0
        %592 = vmatmul.mubr.bf16.gmra.mrb[0].mxu0 %v537
        %v593 = vpop.f32.mrb[0].mxu0
        %v594 = vadd.f32 %v373, %v593
        %v595 = vpop.f32.mrb[0].mxu0
        %v596 = vpop.f32.mrb[0].mxu0
        %v597 = vadd.f32 %v373, %v596
        %v598 = vpop.f32.mrb[0].mxu0
        %599 = vmatprep.mubr.bf16.mxu0 0
        %600 = vmatmul.mubr.bf16.gmra.mrb[0].mxu0 %v538
        %v601 = vpop.f32.mrb[0].mxu0
        %v602 = vadd.f32 %v373, %v601
        %v603 = vpop.f32.mrb[0].mxu0
        %v604 = vpop.f32.mrb[0].mxu0
        %v605 = vadd.f32 %v373, %v604
        %v606 = vpop.f32.mrb[0].mxu0
        %607 = vmatprep.mubr.bf16.mxu0 0
        %608 = vmatmul.mubr.bf16.gmra.mrb[0].mxu0 %v539
        %v609 = vpop.f32.mrb[0].mxu0
        %v610 = vadd.f32 %v373, %v609
        %v611 = vpop.f32.mrb[0].mxu0
        %v612 = vpop.f32.mrb[0].mxu0
        %v613 = vadd.f32 %v373, %v612
        %v614 = vpop.f32.mrb[0].mxu0
        %615 = vmatprep.mubr.bf16.mxu0 0
        %616 = vmatmul.mubr.bf16.gmra.mrb[0].mxu0 %v540
        %v617 = vpop.f32.mrb[0].mxu0
        %v618 = vadd.f32 %v373, %v617
        %v619 = vpop.f32.mrb[0].mxu0
        %v620 = vpop.f32.mrb[0].mxu0
        %v621 = vadd.f32 %v373, %v620
        %v622 = vpop.f32.mrb[0].mxu0
        %623 = vmatprep.mubr.bf16.mxu0 0
        %624 = vmatmul.mubr.bf16.gmra.mrb[0].mxu0 %v541
        %v625 = vpop.f32.mrb[0].mxu0
        %v626 = vadd.f32 %v373, %v625
        %v627 = vpop.f32.mrb[0].mxu0
        %v628 = vpop.f32.mrb[0].mxu0
        %v629 = vadd.f32 %v373, %v628
        %v630 = vpop.f32.mrb[0].mxu0
        %631 = vmatprep.mubr.bf16.mxu0 0
        %632 = vmatmul.mubr.bf16.gmra.mrb[0].mxu0 %v542
        %v633 = vpop.f32.mrb[0].mxu0
        %v634 = vadd.f32 %v373, %v633
        %v635 = vpop.f32.mrb[0].mxu0
        %v636 = vpop.f32.mrb[0].mxu0
        %v637 = vadd.f32 %v373, %v636
        %v638 = vpop.f32.mrb[0].mxu0
        %639 = vdwg.mxu0
        %v640 = vmax.f32 %v578, 0.0
        %v641 = vmax.f32 %v581, 0.0
        %v642 = vmax.f32 %v586, 0.0
        %v643 = vmax.f32 %v589, 0.0
        %v644 = vmax.f32 %v594, 0.0
        %v645 = vmax.f32 %v597, 0.0
        %v646 = vmax.f32 %v602, 0.0
        %v647 = vmax.f32 %v605, 0.0
        %v648 = vmax.f32 %v610, 0.0
        %v649 = vmax.f32 %v613, 0.0
        %v650 = vmax.f32 %v618, 0.0
        %v651 = vmax.f32 %v621, 0.0
        %v652 = vmax.f32 %v626, 0.0
        %v653 = vmax.f32 %v629, 0.0
        %v654 = vmax.f32 %v634, 0.0
        %v655 = vmax.f32 %v637, 0.0
        %v656 = vpack.c.bf16 %v641, %v640
        %v657 = vpack.c.bf16 %v643, %v642
        %v658 = vpack.c.bf16 %v645, %v644
        %v659 = vpack.c.bf16 %v647, %v646
        %v660 = vpack.c.bf16 %v649, %v648
        %v661 = vpack.c.bf16 %v651, %v650
        %v662 = vpack.c.bf16 %v653, %v652
        %v663 = vpack.c.bf16 %v655, %v654
        %v664 = vld [vmem:[%s1 + $0x80] sm:$0xf]
        %v665 = vld [vmem:[%s1 + $0x84] sm:$0xf]
        %v666 = vld [vmem:[%s1 + $0x88] sm:$0xf]
        %v667 = vld [vmem:[%s1 + $0x8c] sm:$0xf]
        %v668 = vld [vmem:[%s1 + $0x90] sm:$0xf]
        %v669 = vld [vmem:[%s1 + $0x94] sm:$0xf]
        %v670 = vld [vmem:[%s1 + $0x98] sm:$0xf]
        %v671 = vld [vmem:[%s1 + $0x9c] sm:$0xf]
        %v672 = vld [vmem:[%s1 + $0xa0] sm:$0xf]
        %v673 = vld [vmem:[%s1 + $0xa4] sm:$0xf]
        %v674 = vld [vmem:[%s1 + $0xa8] sm:$0xf]
        %v675 = vld [vmem:[%s1 + $0xac] sm:$0xf]
        %v676 = vld [vmem:[%s1 + $0xb0] sm:$0xf]
        %v677 = vld [vmem:[%s1 + $0xb4] sm:$0xf]
        %v678 = vld [vmem:[%s1 + $0xb8] sm:$0xf]
        %v679 = vld [vmem:[%s1 + $0xbc] sm:$0xf]
        %v680 = vld [vmem:[%s2 + $0x2] sm:$0x1]
        %v681 = vlaneseq
        %v682 = vshrl.u32 %v681, 7
        %v683 = vsub.s32 0, %v682
        %v684 = vrot.slane %v680, %v683
        %v701 = vunpack.c.l.b16 %v664
        %v702 = vunpack.c.l.b16 %v665
        %v703 = vunpack.c.l.b16 %v666
        %v704 = vunpack.c.l.b16 %v667
        %v705 = vunpack.c.l.b16 %v668
        %v706 = vunpack.c.l.b16 %v669
        %v707 = vunpack.c.l.b16 %v670
        %v708 = vunpack.c.l.b16 %v671
        %v709 = vunpack.c.l.b16 %v672
        %v710 = vunpack.c.l.b16 %v673
        %v711 = vunpack.c.l.b16 %v674
        %v712 = vunpack.c.l.b16 %v675
        %v713 = vunpack.c.l.b16 %v676
        %v714 = vunpack.c.l.b16 %v677
        %v715 = vunpack.c.l.b16 %v678
        %v716 = vunpack.c.l.b16 %v679
        %v717 = vpack.c.b16 %v702, %v701
        %v718 = vpack.c.b16 %v704, %v703
        %v719 = vpack.c.b16 %v706, %v705
        %v720 = vpack.c.b16 %v708, %v707
        %v721 = vpack.c.b16 %v710, %v709
        %v722 = vpack.c.b16 %v712, %v711
        %v723 = vpack.c.b16 %v714, %v713
        %v724 = vpack.c.b16 %v716, %v715
        %733 = vmatprep.subr.bf16.mxu0 0
        %734 = vmatpush1.bf16.msra.mxu0 %v717
        %735 = vmatprep.subr.bf16.mxu0 0
        %736 = vmatpush1.bf16.msra.mxu0 %v718
        %737 = vmatprep.subr.bf16.mxu0 0
        %738 = vmatpush1.bf16.msra.mxu0 %v719
        %739 = vmatprep.subr.bf16.mxu0 0
        %740 = vmatpush1.bf16.msra.mxu0 %v720
        %741 = vmatprep.subr.bf16.mxu0 0
        %742 = vmatpush1.bf16.msra.mxu0 %v721
        %743 = vmatprep.subr.bf16.mxu0 0
        %744 = vmatpush1.bf16.msra.mxu0 %v722
        %745 = vmatprep.subr.bf16.mxu0 0
        %746 = vmatpush1.bf16.msra.mxu0 %v723
        %747 = vmatprep.subr.bf16.mxu0 0
        %748 = vmatpush1.bf16.msra.mxu0 %v724
        %749 = vmatprep.subr.bf16.mxu0 0
        %750 = vmatpush1.bf16.msra.mxu0 0
        %751 = vmatprep.subr.bf16.mxu0 0
        %752 = vmatpush1.bf16.msra.mxu0 0
        %753 = vmatprep.subr.bf16.mxu0 0
        %754 = vmatpush1.bf16.msra.mxu0 0
        %755 = vmatprep.subr.bf16.mxu0 0
        %756 = vmatpush1.bf16.msra.mxu0 0
        %757 = vmatprep.subr.bf16.mxu0 0
        %758 = vmatpush1.bf16.msra.mxu0 0
        %759 = vmatprep.subr.bf16.mxu0 0
        %760 = vmatpush1.bf16.msra.mxu0 0
        %761 = vmatprep.subr.bf16.mxu0 0
        %762 = vmatpush1.bf16.msra.mxu0 0
        %763 = vmatprep.subr.bf16.mxu0 0
        %764 = vmatpush1.bf16.msra.mxu0 0
        %765 = vmatprep.mubr.bf16.mxu0 0
        %766 = vmatmul.mubr.bf16.gmra.mrb[0].mxu0 %v656
        %v767 = vpop.f32.mrb[0].mxu0
        %v768 = vadd.f32 %v684, %v767
        %v769 = vpop.f32.mrb[0].mxu0
        %v770 = vpop.f32.mrb[0].mxu0
        %v771 = vadd.f32 %v684, %v770
        %v772 = vpop.f32.mrb[0].mxu0
        %773 = vmatprep.mubr.bf16.mxu0 0
        %774 = vmatmul.mubr.bf16.gmra.mrb[0].mxu0 %v657
        %v775 = vpop.f32.mrb[0].mxu0
        %v776 = vadd.f32 %v684, %v775
        %v777 = vpop.f32.mrb[0].mxu0
        %v778 = vpop.f32.mrb[0].mxu0
        %v779 = vadd.f32 %v684, %v778
        %v780 = vpop.f32.mrb[0].mxu0
        %781 = vmatprep.mubr.bf16.mxu0 0
        %782 = vmatmul.mubr.bf16.gmra.mrb[0].mxu0 %v658
        %v783 = vpop.f32.mrb[0].mxu0
        %v784 = vadd.f32 %v684, %v783
        %v785 = vpop.f32.mrb[0].mxu0
        %v786 = vpop.f32.mrb[0].mxu0
        %v787 = vadd.f32 %v684, %v786
        %v788 = vpop.f32.mrb[0].mxu0
        %789 = vmatprep.mubr.bf16.mxu0 0
        %790 = vmatmul.mubr.bf16.gmra.mrb[0].mxu0 %v659
        %v791 = vpop.f32.mrb[0].mxu0
        %v792 = vadd.f32 %v684, %v791
        %v793 = vpop.f32.mrb[0].mxu0
        %v794 = vpop.f32.mrb[0].mxu0
        %v795 = vadd.f32 %v684, %v794
        %v796 = vpop.f32.mrb[0].mxu0
        %797 = vmatprep.mubr.bf16.mxu0 0
        %798 = vmatmul.mubr.bf16.gmra.mrb[0].mxu0 %v660
        %v799 = vpop.f32.mrb[0].mxu0
        %v800 = vadd.f32 %v684, %v799
        %v801 = vpop.f32.mrb[0].mxu0
        %v802 = vpop.f32.mrb[0].mxu0
        %v803 = vadd.f32 %v684, %v802
        %v804 = vpop.f32.mrb[0].mxu0
        %805 = vmatprep.mubr.bf16.mxu0 0
        %806 = vmatmul.mubr.bf16.gmra.mrb[0].mxu0 %v661
        %v807 = vpop.f32.mrb[0].mxu0
        %v808 = vadd.f32 %v684, %v807
        %v809 = vpop.f32.mrb[0].mxu0
        %v810 = vpop.f32.mrb[0].mxu0
        %v811 = vadd.f32 %v684, %v810
        %v812 = vpop.f32.mrb[0].mxu0
        %813 = vmatprep.mubr.bf16.mxu0 0
        %814 = vmatmul.mubr.bf16.gmra.mrb[0].mxu0 %v662
        %v815 = vpop.f32.mrb[0].mxu0
        %v816 = vadd.f32 %v684, %v815
        %v817 = vpop.f32.mrb[0].mxu0
        %v818 = vpop.f32.mrb[0].mxu0
        %v819 = vadd.f32 %v684, %v818
        %v820 = vpop.f32.mrb[0].mxu0
        %821 = vmatprep.mubr.bf16.mxu0 0
        %822 = vmatmul.mubr.bf16.gmra.mrb[0].mxu0 %v663
        %v823 = vpop.f32.mrb[0].mxu0
        %v824 = vadd.f32 %v684, %v823
        %v825 = vpop.f32.mrb[0].mxu0
        %v826 = vpop.f32.mrb[0].mxu0
        %v827 = vadd.f32 %v684, %v826
        %v828 = vpop.f32.mrb[0].mxu0
        %829 = vdwg.mxu0
        %v830 = vmax.f32 %v768, 0.0
        %v831 = vmax.f32 %v771, 0.0
        %v832 = vmax.f32 %v776, 0.0
        %v833 = vmax.f32 %v779, 0.0
        %v834 = vmax.f32 %v784, 0.0
        %v835 = vmax.f32 %v787, 0.0
        %v836 = vmax.f32 %v792, 0.0
        %v837 = vmax.f32 %v795, 0.0
        %v838 = vmax.f32 %v800, 0.0
        %v839 = vmax.f32 %v803, 0.0
        %v840 = vmax.f32 %v808, 0.0
        %v841 = vmax.f32 %v811, 0.0
        %v842 = vmax.f32 %v816, 0.0
        %v843 = vmax.f32 %v819, 0.0
        %v844 = vmax.f32 %v824, 0.0
        %v845 = vmax.f32 %v827, 0.0
        %v846 = vpack.c.bf16 %v831, %v830
        %v847 = vpack.c.bf16 %v833, %v832
        %v848 = vpack.c.bf16 %v835, %v834
        %v849 = vpack.c.bf16 %v837, %v836
        %v850 = vpack.c.bf16 %v839, %v838
        %v851 = vpack.c.bf16 %v841, %v840
        %v852 = vpack.c.bf16 %v843, %v842
        %v853 = vpack.c.bf16 %v845, %v844
        %v854 = vld [vmem:[%s1 + $0xc0] sm:$0xf]
        %v855 = vld [vmem:[%s1 + $0xc4] sm:$0xf]
        %v856 = vld [vmem:[%s1 + $0xc8] sm:$0xf]
        %v857 = vld [vmem:[%s1 + $0xcc] sm:$0xf]
        %v858 = vld [vmem:[%s1 + $0xd0] sm:$0xf]
        %v859 = vld [vmem:[%s1 + $0xd4] sm:$0xf]
        %v860 = vld [vmem:[%s1 + $0xd8] sm:$0xf]
        %v861 = vld [vmem:[%s1 + $0xdc] sm:$0xf]
        %v862 = vld [vmem:[%s1 + $0xe0] sm:$0xf]
        %v863 = vld [vmem:[%s1 + $0xe4] sm:$0xf]
        %v864 = vld [vmem:[%s1 + $0xe8] sm:$0xf]
        %v865 = vld [vmem:[%s1 + $0xec] sm:$0xf]
        %v866 = vld [vmem:[%s1 + $0xf0] sm:$0xf]
        %v867 = vld [vmem:[%s1 + $0xf4] sm:$0xf]
        %v868 = vld [vmem:[%s1 + $0xf8] sm:$0xf]
        %v869 = vld [vmem:[%s1 + $0xfc] sm:$0xf]
        %v870 = vld [vmem:[%s2 + $0x3] sm:$0x1]
        %v871 = vlaneseq
        %v872 = vshrl.u32 %v871, 7
        %v873 = vsub.s32 0, %v872
        %v874 = vrot.slane %v870, %v873
        %v891 = vunpack.c.l.b16 %v854
        %v892 = vunpack.c.l.b16 %v855
        %v893 = vunpack.c.l.b16 %v856
        %v894 = vunpack.c.l.b16 %v857
        %v895 = vunpack.c.l.b16 %v858
        %v896 = vunpack.c.l.b16 %v859
        %v897 = vunpack.c.l.b16 %v860
        %v898 = vunpack.c.l.b16 %v861
        %v899 = vunpack.c.l.b16 %v862
        %v900 = vunpack.c.l.b16 %v863
        %v901 = vunpack.c.l.b16 %v864
        %v902 = vunpack.c.l.b16 %v865
        %v903 = vunpack.c.l.b16 %v866
        %v904 = vunpack.c.l.b16 %v867
        %v905 = vunpack.c.l.b16 %v868
        %v906 = vunpack.c.l.b16 %v869
        %v907 = vpack.c.b16 %v892, %v891
        %v908 = vpack.c.b16 %v894, %v893
        %v909 = vpack.c.b16 %v896, %v895
        %v910 = vpack.c.b16 %v898, %v897
        %v911 = vpack.c.b16 %v900, %v899
        %v912 = vpack.c.b16 %v902, %v901
        %v913 = vpack.c.b16 %v904, %v903
        %v914 = vpack.c.b16 %v906, %v905
        %923 = vmatprep.subr.bf16.mxu0 0
        %924 = vmatpush1.bf16.msra.mxu0 %v907
        %925 = vmatprep.subr.bf16.mxu0 0
        %926 = vmatpush1.bf16.msra.mxu0 %v908
        %927 = vmatprep.subr.bf16.mxu0 0
        %928 = vmatpush1.bf16.msra.mxu0 %v909
        %929 = vmatprep.subr.bf16.mxu0 0
        %930 = vmatpush1.bf16.msra.mxu0 %v910
        %931 = vmatprep.subr.bf16.mxu0 0
        %932 = vmatpush1.bf16.msra.mxu0 %v911
        %933 = vmatprep.subr.bf16.mxu0 0
        %934 = vmatpush1.bf16.msra.mxu0 %v912
        %935 = vmatprep.subr.bf16.mxu0 0
        %936 = vmatpush1.bf16.msra.mxu0 %v913
        %937 = vmatprep.subr.bf16.mxu0 0
        %938 = vmatpush1.bf16.msra.mxu0 %v914
        %939 = vmatprep.subr.bf16.mxu0 0
        %940 = vmatpush1.bf16.msra.mxu0 0
        %941 = vmatprep.subr.bf16.mxu0 0
        %942 = vmatpush1.bf16.msra.mxu0 0
        %943 = vmatprep.subr.bf16.mxu0 0
        %944 = vmatpush1.bf16.msra.mxu0 0
        %945 = vmatprep.subr.bf16.mxu0 0
        %946 = vmatpush1.bf16.msra.mxu0 0
        %947 = vmatprep.subr.bf16.mxu0 0
        %948 = vmatpush1.bf16.msra.mxu0 0
        %949 = vmatprep.subr.bf16.mxu0 0
        %950 = vmatpush1.bf16.msra.mxu0 0
        %951 = vmatprep.subr.bf16.mxu0 0
        %952 = vmatpush1.bf16.msra.mxu0 0
        %953 = vmatprep.subr.bf16.mxu0 0
        %954 = vmatpush1.bf16.msra.mxu0 0
        %955 = vmatprep.mubr.bf16.mxu0 0
        %956 = vmatmul.mubr.bf16.gmra.mrb[0].mxu0 %v846
        %v957 = vpop.f32.mrb[0].mxu0
        %v958 = vadd.f32 %v874, %v957
        %v959 = vpop.f32.mrb[0].mxu0
        %v960 = vpop.f32.mrb[0].mxu0
        %v961 = vadd.f32 %v874, %v960
        %v962 = vpop.f32.mrb[0].mxu0
        %963 = vmatprep.mubr.bf16.mxu0 0
        %964 = vmatmul.mubr.bf16.gmra.mrb[0].mxu0 %v847
        %v965 = vpop.f32.mrb[0].mxu0
        %v966 = vadd.f32 %v874, %v965
        %v967 = vpop.f32.mrb[0].mxu0
        %v968 = vpop.f32.mrb[0].mxu0
        %v969 = vadd.f32 %v874, %v968
        %v970 = vpop.f32.mrb[0].mxu0
        %971 = vmatprep.mubr.bf16.mxu0 0
        %972 = vmatmul.mubr.bf16.gmra.mrb[0].mxu0 %v848
        %v973 = vpop.f32.mrb[0].mxu0
        %v974 = vadd.f32 %v874, %v973
        %v975 = vpop.f32.mrb[0].mxu0
        %v976 = vpop.f32.mrb[0].mxu0
        %v977 = vadd.f32 %v874, %v976
        %v978 = vpop.f32.mrb[0].mxu0
        %979 = vmatprep.mubr.bf16.mxu0 0
        %980 = vmatmul.mubr.bf16.gmra.mrb[0].mxu0 %v849
        %v981 = vpop.f32.mrb[0].mxu0
        %v982 = vadd.f32 %v874, %v981
        %v983 = vpop.f32.mrb[0].mxu0
        %v984 = vpop.f32.mrb[0].mxu0
        %v985 = vadd.f32 %v874, %v984
        %v986 = vpop.f32.mrb[0].mxu0
        %987 = vmatprep.mubr.bf16.mxu0 0
        %988 = vmatmul.mubr.bf16.gmra.mrb[0].mxu0 %v850
        %v989 = vpop.f32.mrb[0].mxu0
        %v990 = vadd.f32 %v874, %v989
        %v991 = vpop.f32.mrb[0].mxu0
        %v992 = vpop.f32.mrb[0].mxu0
        %v993 = vadd.f32 %v874, %v992
        %v994 = vpop.f32.mrb[0].mxu0
        %995 = vmatprep.mubr.bf16.mxu0 0
        %996 = vmatmul.mubr.bf16.gmra.mrb[0].mxu0 %v851
        %v997 = vpop.f32.mrb[0].mxu0
        %v998 = vadd.f32 %v874, %v997
        %v999 = vpop.f32.mrb[0].mxu0
        %v1000 = vpop.f32.mrb[0].mxu0
        %v1001 = vadd.f32 %v874, %v1000
        %v1002 = vpop.f32.mrb[0].mxu0
        %1003 = vmatprep.mubr.bf16.mxu0 0
        %1004 = vmatmul.mubr.bf16.gmra.mrb[0].mxu0 %v852
        %v1005 = vpop.f32.mrb[0].mxu0
        %v1006 = vadd.f32 %v874, %v1005
        %v1007 = vpop.f32.mrb[0].mxu0
        %v1008 = vpop.f32.mrb[0].mxu0
        %v1009 = vadd.f32 %v874, %v1008
        %v1010 = vpop.f32.mrb[0].mxu0
        %1011 = vmatprep.mubr.bf16.mxu0 0
        %1012 = vmatmul.mubr.bf16.gmra.mrb[0].mxu0 %v853
        %v1013 = vpop.f32.mrb[0].mxu0
        %v1014 = vadd.f32 %v874, %v1013
        %v1015 = vpop.f32.mrb[0].mxu0
        %v1016 = vpop.f32.mrb[0].mxu0
        %v1017 = vadd.f32 %v874, %v1016
        %v1018 = vpop.f32.mrb[0].mxu0
        %1019 = vdwg.mxu0
        %v1020 = vld [vmem:[%s2 + $0x4] sm:$0x1]
        %v1021 = vlaneseq
        %v1022 = vshrl.u32 %v1021, 7
        %v1023 = vsub.s32 0, %v1022
        %v1024 = vrot.slane %v1020, %v1023
        %v1025 = vadd.f32 %v958, %v1024
        %v1026 = vadd.f32 %v961, %v1024
        %v1027 = vadd.f32 %v966, %v1024
        %v1028 = vadd.f32 %v969, %v1024
        %v1029 = vadd.f32 %v974, %v1024
        %v1030 = vadd.f32 %v977, %v1024
        %v1031 = vadd.f32 %v982, %v1024
        %v1032 = vadd.f32 %v985, %v1024
        %v1033 = vadd.f32 %v990, %v1024
        %v1034 = vadd.f32 %v993, %v1024
        %v1035 = vadd.f32 %v998, %v1024
        %v1036 = vadd.f32 %v1001, %v1024
        %v1037 = vadd.f32 %v1006, %v1024
        %v1038 = vadd.f32 %v1009, %v1024
        %v1039 = vadd.f32 %v1014, %v1024
        %v1040 = vadd.f32 %v1017, %v1024
        %1041 = vmax.xlane.f32.xlu0 %v1025
        %v1042 = vpop.xlane.xlu0 %1041
        %1043 = vmax.xlane.f32.xlu0 %v1026
        %v1044 = vpop.xlane.xlu0 %1043
        %1045 = vmax.xlane.f32.xlu0 %v1027
        %v1046 = vpop.xlane.xlu0 %1045
        %1047 = vmax.xlane.f32.xlu0 %v1028
        %v1048 = vpop.xlane.xlu0 %1047
        %1049 = vmax.xlane.f32.xlu0 %v1029
        %v1050 = vpop.xlane.xlu0 %1049
        %1051 = vmax.xlane.f32.xlu0 %v1030
        %v1052 = vpop.xlane.xlu0 %1051
        %1053 = vmax.xlane.f32.xlu0 %v1031
        %v1054 = vpop.xlane.xlu0 %1053
        %1055 = vmax.xlane.f32.xlu0 %v1032
        %v1056 = vpop.xlane.xlu0 %1055
        %1057 = vmax.xlane.f32.xlu0 %v1033
        %v1058 = vpop.xlane.xlu0 %1057
        %1059 = vmax.xlane.f32.xlu0 %v1034
        %v1060 = vpop.xlane.xlu0 %1059
        %1061 = vmax.xlane.f32.xlu0 %v1035
        %v1062 = vpop.xlane.xlu0 %1061
        %1063 = vmax.xlane.f32.xlu0 %v1036
        %v1064 = vpop.xlane.xlu0 %1063
        %1065 = vmax.xlane.f32.xlu0 %v1037
        %v1066 = vpop.xlane.xlu0 %1065
        %1067 = vmax.xlane.f32.xlu0 %v1038
        %v1068 = vpop.xlane.xlu0 %1067
        %1069 = vmax.xlane.f32.xlu0 %v1039
        %v1070 = vpop.xlane.xlu0 %1069
        %1071 = vmax.xlane.f32.xlu0 %v1040
        %v1072 = vpop.xlane.xlu0 %1071
        %v1073 = vsub.f32 %v1025, %v1042
        %v1074 = vsub.f32 %v1026, %v1044
        %v1075 = vsub.f32 %v1027, %v1046
        %v1076 = vsub.f32 %v1028, %v1048
        %v1077 = vsub.f32 %v1029, %v1050
        %v1078 = vsub.f32 %v1030, %v1052
        %v1079 = vsub.f32 %v1031, %v1054
        %v1080 = vsub.f32 %v1032, %v1056
        %v1081 = vsub.f32 %v1033, %v1058
        %v1082 = vsub.f32 %v1034, %v1060
        %v1083 = vsub.f32 %v1035, %v1062
        %v1084 = vsub.f32 %v1036, %v1064
        %v1085 = vsub.f32 %v1037, %v1066
        %v1086 = vsub.f32 %v1038, %v1068
        %v1087 = vsub.f32 %v1039, %v1070
        %v1088 = vsub.f32 %v1040, %v1072
        %v1089 = vmul.f32 %v1073, 1.442695
        %v1090 = vpow.pop %v1089
        %v1091 = vmul.f32 %v1074, 1.442695
        %v1092 = vpow.pop %v1091
        %v1093 = vmul.f32 %v1075, 1.442695
        %v1094 = vpow.pop %v1093
        %v1095 = vmul.f32 %v1076, 1.442695
        %v1096 = vpow.pop %v1095
        %v1097 = vmul.f32 %v1077, 1.442695
        %v1098 = vpow.pop %v1097
        %v1099 = vmul.f32 %v1078, 1.442695
        %v1100 = vpow.pop %v1099
        %v1101 = vmul.f32 %v1079, 1.442695
        %v1102 = vpow.pop %v1101
        %v1103 = vmul.f32 %v1080, 1.442695
        %v1104 = vpow.pop %v1103
        %v1105 = vmul.f32 %v1081, 1.442695
        %v1106 = vpow.pop %v1105
        %v1107 = vmul.f32 %v1082, 1.442695
        %v1108 = vpow.pop %v1107
        %v1109 = vmul.f32 %v1083, 1.442695
        %v1110 = vpow.pop %v1109
        %v1111 = vmul.f32 %v1084, 1.442695
        %v1112 = vpow.pop %v1111
        %v1113 = vmul.f32 %v1085, 1.442695
        %v1114 = vpow.pop %v1113
        %v1115 = vmul.f32 %v1086, 1.442695
        %v1116 = vpow.pop %v1115
        %v1117 = vmul.f32 %v1087, 1.442695
        %v1118 = vpow.pop %v1117
        %v1119 = vmul.f32 %v1088, 1.442695
        %v1120 = vpow.pop %v1119
        %1121 = vadd.xlane.f32.xlu0 %v1090
        %v1122 = vpop.xlane.xlu0 %1121
        %1123 = vadd.xlane.f32.xlu0 %v1092
        %v1124 = vpop.xlane.xlu0 %1123
        %1125 = vadd.xlane.f32.xlu0 %v1094
        %v1126 = vpop.xlane.xlu0 %1125
        %1127 = vadd.xlane.f32.xlu0 %v1096
        %v1128 = vpop.xlane.xlu0 %1127
        %1129 = vadd.xlane.f32.xlu0 %v1098
        %v1130 = vpop.xlane.xlu0 %1129
        %1131 = vadd.xlane.f32.xlu0 %v1100
        %v1132 = vpop.xlane.xlu0 %1131
        %1133 = vadd.xlane.f32.xlu0 %v1102
        %v1134 = vpop.xlane.xlu0 %1133
        %1135 = vadd.xlane.f32.xlu0 %v1104
        %v1136 = vpop.xlane.xlu0 %1135
        %1137 = vadd.xlane.f32.xlu0 %v1106
        %v1138 = vpop.xlane.xlu0 %1137
        %1139 = vadd.xlane.f32.xlu0 %v1108
        %v1140 = vpop.xlane.xlu0 %1139
        %1141 = vadd.xlane.f32.xlu0 %v1110
        %v1142 = vpop.xlane.xlu0 %1141
        %1143 = vadd.xlane.f32.xlu0 %v1112
        %v1144 = vpop.xlane.xlu0 %1143
        %1145 = vadd.xlane.f32.xlu0 %v1114
        %v1146 = vpop.xlane.xlu0 %1145
        %1147 = vadd.xlane.f32.xlu0 %v1116
        %v1148 = vpop.xlane.xlu0 %1147
        %1149 = vadd.xlane.f32.xlu0 %v1118
        %v1150 = vpop.xlane.xlu0 %1149
        %1151 = vadd.xlane.f32.xlu0 %v1120
        %v1152 = vpop.xlane.xlu0 %1151
        %v1153 = vrcp.pop %v1122
        %v1154 = vmul.f32 %v1090, %v1153
        %v1155 = vrcp.pop %v1124
        %v1156 = vmul.f32 %v1092, %v1155
        %v1157 = vrcp.pop %v1126
        %v1158 = vmul.f32 %v1094, %v1157
        %v1159 = vrcp.pop %v1128
        %v1160 = vmul.f32 %v1096, %v1159
        %v1161 = vrcp.pop %v1130
        %v1162 = vmul.f32 %v1098, %v1161
        %v1163 = vrcp.pop %v1132
        %v1164 = vmul.f32 %v1100, %v1163
        %v1165 = vrcp.pop %v1134
        %v1166 = vmul.f32 %v1102, %v1165
        %v1167 = vrcp.pop %v1136
        %v1168 = vmul.f32 %v1104, %v1167
        %v1169 = vrcp.pop %v1138
        %v1170 = vmul.f32 %v1106, %v1169
        %v1171 = vrcp.pop %v1140
        %v1172 = vmul.f32 %v1108, %v1171
        %v1173 = vrcp.pop %v1142
        %v1174 = vmul.f32 %v1110, %v1173
        %v1175 = vrcp.pop %v1144
        %v1176 = vmul.f32 %v1112, %v1175
        %v1177 = vrcp.pop %v1146
        %v1178 = vmul.f32 %v1114, %v1177
        %v1179 = vrcp.pop %v1148
        %v1180 = vmul.f32 %v1116, %v1179
        %v1181 = vrcp.pop %v1150
        %v1182 = vmul.f32 %v1118, %v1181
        %v1183 = vrcp.pop %v1152
        %v1184 = vmul.f32 %v1120, %v1183
        %1185 = vst [vmem:[%s164] sm:$0xff] %v1154
        %1186 = vst [vmem:[%s164 + $0x8] sm:$0xff] %v1156
        %1187 = vst [vmem:[%s164 + $0x10] sm:$0xff] %v1158
        %1188 = vst [vmem:[%s164 + $0x18] sm:$0xff] %v1160
        %1189 = vst [vmem:[%s164 + $0x20] sm:$0xff] %v1162
        %1190 = vst [vmem:[%s164 + $0x28] sm:$0xff] %v1164
        %1191 = vst [vmem:[%s164 + $0x30] sm:$0xff] %v1166
        %1192 = vst [vmem:[%s164 + $0x38] sm:$0xff] %v1168
        %1193 = vst [vmem:[%s164 + $0x40] sm:$0xff] %v1170
        %1194 = vst [vmem:[%s164 + $0x48] sm:$0xff] %v1172
        %1195 = vst [vmem:[%s164 + $0x50] sm:$0xff] %v1174
        %1196 = vst [vmem:[%s164 + $0x58] sm:$0xff] %v1176
        %1197 = vst [vmem:[%s164 + $0x60] sm:$0xff] %v1178
        %1198 = vst [vmem:[%s164 + $0x68] sm:$0xff] %v1180
        %1199 = vst [vmem:[%s164 + $0x70] sm:$0xff] %v1182
        %1200 = vst [vmem:[%s164 + $0x78] sm:$0xff] %v1184
        %s1201 = sand.u32 %s93, 1
        %s1202 = scalar_lea.sflag [#allocation3], %s1201
        %s1203 = sand.u32 %s93, 1
        %s1204 = smul.addr %s1203, 128
        %s1205 = scalar_lea.vmem [#allocation2], %s1204
        // Predicated region
        $region33: #{tpu_custom_call.1} parent=31 // pred_check
          %p1206 = pneg %p103
        $region34: #{tpu_custom_call.1} parent=31 // pred_check_branch
          %1208 = sbr.rel (%p1206) target = $region36
        $region35: #{tpu_custom_call.1} parent=31 // pred_region
          %s1209 = smul.u32 16, %s17
          %s1211 = ssub.s32 2048, 2048
          %1212 = vsyncadd %s1202, %s1211
          %s1213 = smul.addr %s1209, 128
          %s1214 = scalar_lea.hbm %s3, %s1213
          %s1215 = sshll.u32 %s1205, 4
          %s1216 = int_to_ptr.vmem [resolvable:$true] %s1215
          %1221 = dma.vmem_to_hbm [thread:$0]  %s1216, 2048, %s1214, %s1202, 128, 128, 8
        $region36: #{tpu_custom_call.1} parent=31 // pred_fallthru
          _
      $region32: #{tpu_custom_call.1} parent=5 // pred_fallthru
        _
      %p1222 = scmp.le.s32.totalorder 2, %s12
      // Predicated region
      $region37: #{tpu_custom_call.1} parent=5 // pred_check
        %p1223 = pneg %p1222
      $region38: #{tpu_custom_call.1} parent=5 // pred_check_branch
        %1225 = sbr.rel (%p1223) target = $region40
      $region39: #{tpu_custom_call.1} parent=5 // pred_region
        %s1226 = ssub.s32 %s12, 2
        // Predicated region
        $region41: #{tpu_custom_call.1} parent=39 // pred_check
          %p1227 = pneg %p109
        $region42: #{tpu_custom_call.1} parent=39 // pred_check_branch
          %1229 = sbr.rel (%p1227) target = $region44
        $region43: #{tpu_custom_call.1} parent=39 // pred_region
          %s1230 = sand.u32 %s94, 1
          %s1231 = scalar_lea.sflag [#allocation3], %s1230
          %s1232 = sand.u32 %s94, 1
          %s1233 = smul.addr %s1232, 128
          %s1234 = scalar_lea.vmem [#allocation2], %s1233
          %1235 = dma.done %s1231, 2048
        $region44: #{tpu_custom_call.1} parent=39 // pred_fallthru
          _
      $region40: #{tpu_custom_call.1} parent=5 // pred_fallthru
        _
    $region6: #{tpu_custom_call.1} parent=1 // loop_footer
      %s16 = sadd.s32 1, %s12
    $region7: #{tpu_custom_call.1} parent=1 // loop_footer_branch
      %11 = sbr.rel target = $region3
    $region8: #{tpu_custom_call.1} parent=1 // loop_exit
      _
    %1236 = vsyncpa [#allocation3], 1
    %s1237 = scalar_lea.sflag [#allocation3], 1
    %1238 = vsyncpa %s1237, 1

</llo_original>
